<compile_context>
chip_gen: v6e
topology: v6e:2x2x1
jax: 0.10.0
libtpu: 0.0.40
codegen_flags: <defaults>
</compile_context>

<pallas_src>
import functools
import math

import jax
import jax.numpy as jnp
from jax.experimental import pallas as pl
from jax.experimental.pallas import tpu as pltpu

ENC_HID_DIM = 64          # => 2*enc_hid = 128 (lane-aligned)
DEC_HID_DIM = 128         # lane-aligned


# ============================ Pallas kernel =================================

def attention_kernel(h_ref, e_ref, wh_ref, we_ref, b_ref, v_ref, o_ref,
                     *, batch, src_len):
    """Fused additive-attention forward.

    h_ref:  (B, D)        decoder hidden state
    e_ref:  (B*S, 2E)     encoder outputs, batch-major tokens
    wh_ref: (D, D)        attn-weight columns acting on hidden (pre-transposed)
    we_ref: (2E, D)       attn-weight columns acting on encoder outputs
    b_ref:  (1, D)        attn bias
    v_ref:  (1, D)        v weight (Linear(D, 1, bias=False))
    o_ref:  (B, S)        softmax over src_len
    """
    d = h_ref.shape[-1]

    # per-batch hidden projection (B, D) and per-token encoder projection (B*S, D)
    hh = jnp.dot(h_ref[...], wh_ref[...], preferred_element_type=jnp.float32)
    ee = jnp.dot(e_ref[...], we_ref[...], preferred_element_type=jnp.float32)

    # (B*S, D) -> (B, S, D) is a free leading-dim split (each (S, D) slab = vregs)
    pre = (ee.reshape(batch, src_len, d)
           + hh[:, None, :]                       # sublane broadcast over S
           + b_ref[...][None, :, :])
    energy = jnp.tanh(pre)                        # EUP transcendental

    # attention logits: v . energy  -> (B, S) with src_len on the lane axis
    scores = jnp.sum(energy * v_ref[...][None, :, :], axis=-1)

    # softmax over src_len (cross-lane max / sum)
    m = jnp.max(scores, axis=-1, keepdims=True)
    p = jnp.exp(scores - m)
    o_ref[...] = p / jnp.sum(p, axis=-1, keepdims=True)


# ============================ wrapper =======================================

def _vmem_spec():
    return pl.BlockSpec(memory_space=pltpu.MemorySpace.VMEM)


@jax.jit
def attention_forward(params, hidden, encoder_outputs):
    """hidden: (B, D); encoder_outputs: (S, B, 2E)  ->  (B, S) softmax weights."""
    src_len, batch, e2 = encoder_outputs.shape

    # glue (fused under jit): (S, B, 2E) -> (B, S, 2E) -> batch-major (B*S, 2E)
    enc_bm = jnp.transpose(encoder_outputs, (1, 0, 2)).reshape(batch * src_len, e2)

    kernel = functools.partial(attention_kernel, batch=batch, src_len=src_len)
    return pl.pallas_call(
        kernel,
        out_shape=jax.ShapeDtypeStruct((batch, src_len), jnp.float32),
        in_specs=[_vmem_spec() for _ in range(6)],
        out_specs=_vmem_spec(),
    )(hidden, enc_bm, params["wh_t"], params["we_t"], params["b"], params["v"])


# ========================= parameters & reference ===========================

def init_params(key, enc_hid_dim, dec_hid_dim):
    """nn.Linear-style init; returns (kernel params, raw PyTorch-layout params)."""
    k1, k2, k3 = jax.random.split(key, 3)
    in_dim = enc_hid_dim * 2 + dec_hid_dim
    a = 1.0 / math.sqrt(in_dim)
    w_attn = jax.random.uniform(k1, (dec_hid_dim, in_dim), jnp.float32, -a, a)
    b_attn = jax.random.uniform(k2, (dec_hid_dim,), jnp.float32, -a, a)
    av = 1.0 / math.sqrt(dec_hid_dim)
    w_v = jax.random.uniform(k3, (1, dec_hid_dim), jnp.float32, -av, av)

    # forward concatenates [hidden, encoder_outputs]: columns [:dec_hid] of
    # W_attn act on hidden, columns [dec_hid:] on the encoder outputs.
    kernel_params = {
        "wh_t": jnp.transpose(w_attn[:, :dec_hid_dim]),   # (D, D)
        "we_t": jnp.transpose(w_attn[:, dec_hid_dim:]),   # (2E, D)
        "b": b_attn.reshape(1, dec_hid_dim),
        "v": w_v.reshape(1, dec_hid_dim),
    }
    torch_params = {"w_attn": w_attn, "b_attn": b_attn, "w_v": w_v}
    return kernel_params, torch_params


def attention_reference(torch_params, hidden, encoder_outputs):
    """Pure-JAX transcription of the PyTorch forward (for correctness check)."""
    src_len = encoder_outputs.shape[0]
    h_rep = jnp.repeat(hidden[:, None, :], src_len, axis=1)        # (B, S, D)
    enc = jnp.transpose(encoder_outputs, (1, 0, 2))                # (B, S, 2E)
    cat = jnp.concatenate([h_rep, enc], axis=2)
    energy = jnp.tanh(cat @ torch_params["w_attn"].T + torch_params["b_attn"])
    attention = (energy @ torch_params["w_v"].T)[..., 0]           # (B, S)
    return jax.nn.softmax(attention, axis=1)


# ================================== main ====================================

if __name__ == "__main__":
    key = jax.random.PRNGKey(0)
    kp, kh, ke = jax.random.split(key, 3)
    kernel_params, torch_params = init_params(kp, ENC_HID_DIM, DEC_HID_DIM)

    B, S = 2, 8
    hidden = jax.random.normal(kh, (B, DEC_HID_DIM), jnp.float32)
    encoder_outputs = jax.random.normal(ke, (S, B, 2 * ENC_HID_DIM), jnp.float32)

    out = attention_forward(kernel_params, hidden, encoder_outputs)
    out = jax.block_until_ready(out)

    assert out.shape == (B, S), out.shape
    assert bool(jnp.all(jnp.isfinite(out)))
    # softmax rows over src_len must sum to 1 and be positive
    assert bool(jnp.all(out > 0.0))
    assert bool(jnp.allclose(jnp.sum(out, axis=1), 1.0, atol=1e-5))
    ref = attention_reference(torch_params, hidden, encoder_outputs)
    assert bool(jnp.allclose(out, ref, atol=1e-5, rtol=1e-5)), \
        float(jnp.max(jnp.abs(out - ref)))
    print("KERNEL_OK")
</pallas_src>

<mosaic_0001>
module attributes {stable_mosaic.version = 11 : i64} {
  func.func @attention_kernel(%arg0: memref<2x128xf32, #tpu.memory_space<vmem>>, %arg1: memref<16x128xf32, #tpu.memory_space<vmem>>, %arg2: memref<128x128xf32, #tpu.memory_space<vmem>>, %arg3: memref<128x128xf32, #tpu.memory_space<vmem>>, %arg4: memref<1x128xf32, #tpu.memory_space<vmem>>, %arg5: memref<1x128xf32, #tpu.memory_space<vmem>>, %arg6: memref<2x8xf32, #tpu.memory_space<vmem>>) attributes {dimension_semantics = [], scalar_prefetch = 0 : i64, scratch_operands = 0 : i64, tpu.core_type = #tpu.core_type<tc>} {
    %c0 = arith.constant 0 : index
    %c0_0 = arith.constant 0 : index
    %0 = vector.load %arg0[%c0, %c0_0] : memref<2x128xf32, #tpu.memory_space<vmem>>, vector<2x128xf32>
    %c0_1 = arith.constant 0 : index
    %c0_2 = arith.constant 0 : index
    %1 = vector.load %arg2[%c0_1, %c0_2] : memref<128x128xf32, #tpu.memory_space<vmem>>, vector<128x128xf32>
    %cst = arith.constant dense<0.000000e+00> : vector<2x128xf32>
    %2 = tpu.matmul %0, %1, %cst {dimension_numbers = #tpu.dot_dimension_numbers<[1], [0], [0], [1], [0, 0, 1, 1], [], []>} : vector<2x128xf32>, vector<128x128xf32>, vector<2x128xf32> -> vector<2x128xf32>
    %c0_3 = arith.constant 0 : index
    %c0_4 = arith.constant 0 : index
    %3 = vector.load %arg1[%c0_3, %c0_4] : memref<16x128xf32, #tpu.memory_space<vmem>>, vector<16x128xf32>
    %c0_5 = arith.constant 0 : index
    %c0_6 = arith.constant 0 : index
    %4 = vector.load %arg3[%c0_5, %c0_6] : memref<128x128xf32, #tpu.memory_space<vmem>>, vector<128x128xf32>
    %cst_7 = arith.constant dense<0.000000e+00> : vector<16x128xf32>
    %5 = tpu.matmul %3, %4, %cst_7 {dimension_numbers = #tpu.dot_dimension_numbers<[1], [0], [0], [1], [0, 0, 1, 1], [], []>} : vector<16x128xf32>, vector<128x128xf32>, vector<16x128xf32> -> vector<16x128xf32>
    %6 = vector.shape_cast %5 : vector<16x128xf32> to vector<2x8x128xf32>
    %7 = vector.shape_cast %2 : vector<2x128xf32> to vector<2x1x128xf32>
    %8 = vector.broadcast %7 : vector<2x1x128xf32> to vector<2x8x128xf32>
    %9 = arith.addf %6, %8 : vector<2x8x128xf32>
    %c0_8 = arith.constant 0 : index
    %c0_9 = arith.constant 0 : index
    %10 = vector.load %arg4[%c0_8, %c0_9] : memref<1x128xf32, #tpu.memory_space<vmem>>, vector<1x128xf32>
    %11 = vector.shape_cast %10 : vector<1x128xf32> to vector<1x1x128xf32>
    %12 = vector.broadcast %11 : vector<1x1x128xf32> to vector<2x8x128xf32>
    %13 = arith.addf %9, %12 : vector<2x8x128xf32>
    %14 = math.tanh %13 : vector<2x8x128xf32>
    %c0_10 = arith.constant 0 : index
    %c0_11 = arith.constant 0 : index
    %15 = vector.load %arg5[%c0_10, %c0_11] : memref<1x128xf32, #tpu.memory_space<vmem>>, vector<1x128xf32>
    %16 = vector.shape_cast %15 : vector<1x128xf32> to vector<1x1x128xf32>
    %17 = vector.broadcast %16 : vector<1x1x128xf32> to vector<2x8x128xf32>
    %18 = arith.mulf %14, %17 : vector<2x8x128xf32>
    %cst_12 = arith.constant dense<0.000000e+00> : vector<2x8xf32>
    %19 = vector.multi_reduction <add>, %18, %cst_12 [2] : vector<2x8x128xf32> to vector<2x8xf32>
    %cst_13 = arith.constant dense<0xFF800000> : vector<2xf32>
    %20 = vector.multi_reduction <maximumf>, %19, %cst_13 [1] : vector<2x8xf32> to vector<2xf32>
    %21 = vector.shape_cast %20 : vector<2xf32> to vector<2x1xf32>
    %22 = vector.broadcast %21 : vector<2x1xf32> to vector<2x8xf32>
    %23 = arith.subf %19, %22 : vector<2x8xf32>
    %24 = math.exp %23 : vector<2x8xf32>
    %cst_14 = arith.constant dense<0.000000e+00> : vector<2xf32>
    %25 = vector.multi_reduction <add>, %24, %cst_14 [1] : vector<2x8xf32> to vector<2xf32>
    %26 = vector.shape_cast %25 : vector<2xf32> to vector<2x1xf32>
    %27 = vector.broadcast %26 : vector<2x1xf32> to vector<2x8xf32>
    %28 = arith.divf %24, %27 : vector<2x8xf32>
    %c0_15 = arith.constant 0 : index
    %c0_16 = arith.constant 0 : index
    %29 = vector.load %arg6[%c0_15, %c0_16] : memref<2x8xf32, #tpu.memory_space<vmem>>, vector<2x8xf32>
    tpu.vector_store %arg6[%c0_15, %c0_16], %28 {strides = array<i32>} : memref<2x8xf32, #tpu.memory_space<vmem>>, vector<2x8xf32>,
    return
  }
}

</mosaic_0001>

<llo_original>
// kernel: attention_forward.1
$region0: #{attention_forward.1}
  #allocation0 [shape = 'u32[]', space=smem, size = 0x4, offset = 0x4, fixed_abs, tag = 'smem constant byte address 0x4 - core index']
  #allocation1 [shape = 'u32[144,128]{1,0:T(1,128)}', space=vmem, size = 0x12000, scoped, tag = 'internal scratch']
  %s0 = inlined_call_operand.vmem [shape: f32[2,128], index: 0, kind: input, shape index: {}]
  %s1 = inlined_call_operand.vmem [shape: f32[16,128], index: 1, kind: input, shape index: {}]
  %s2 = inlined_call_operand.hbm [shape: f32[128,128], index: 2, kind: input, shape index: {}]
  %s3 = inlined_call_operand.hbm [shape: f32[128,128], index: 3, kind: input, shape index: {}]
  %s4 = inlined_call_operand.vmem [shape: f32[1,128], index: 4, kind: input, shape index: {}]
  %s5 = inlined_call_operand.vmem [shape: f32[1,128], index: 5, kind: input, shape index: {}]
  %s6 = inlined_call_operand.hbm [shape: f32[2,8], index: 6, kind: output, shape index: {}]
  %s7 = sld [smem:[#allocation0]]
  $region42: #{attention_forward.1} parent=0
    _
  %s9 = ssub.s32 1, %s7
  %s10 = scalar_select 0, %s9, %s7
  $region1: #{attention_forward.1} parent=0
    #allocation2 [shape = 'u8[65536]{0}', space=vmem, size = 0x10000, scoped, tag = 'input window, operand 2, single buffered']
    #allocation3 [shape = 's32[1]{0}', space=sflag, size = 0x4, scoped, tag = 'scoped memory for attention_forward.1']
    #allocation4 [shape = 's32[1]{0}', space=sflag, size = 0x4, scoped, tag = 'scoped memory for attention_forward.1']
    #allocation5 [shape = 'u8[65536]{0}', space=vmem, size = 0x10000, scoped, tag = 'input window, operand 3, single buffered']
    #allocation6 [shape = 's32[1]{0}', space=sflag, size = 0x4, scoped, tag = 'scoped memory for attention_forward.1']
    #allocation7 [shape = 'u8[1024]{0}', space=vmem, size = 0x400, scoped, tag = 'output window, operand 0, single buffered']
    %11 = vsyncpa [#allocation3], 0
    %12 = vsyncpa [#allocation6], 0
    %13 = vsyncpa [#allocation4], 0
    // Predicated region
    $region2: #{attention_forward.1} parent=1 // pred_check
      _
    $region3: #{attention_forward.1} parent=1 // pred_check_branch
      %15 = sbr.rel (0) target = $region5
    $region4: #{attention_forward.1} parent=1 // pred_region
      _
    $region5: #{attention_forward.1} parent=1 // pred_fallthru
      _
    // Predicated region
    $region6: #{attention_forward.1} parent=1 // pred_check
      _
    $region7: #{attention_forward.1} parent=1 // pred_check_branch
      %17 = sbr.rel (0) target = $region9
    $region8: #{attention_forward.1} parent=1 // pred_region
      _
    $region9: #{attention_forward.1} parent=1 // pred_fallthru
      _
    // Predicated region
    $region10: #{attention_forward.1} parent=1 // pred_check
      _
    $region11: #{attention_forward.1} parent=1 // pred_check_branch
      %19 = sbr.rel (0) target = $region13
    $region12: #{attention_forward.1} parent=1 // pred_region
      %s21 = ssub.s32 2048, 2048
      %22 = vsyncadd [#allocation3], %s21
      %s23 = sshll.u32 [#allocation2], 4
      %s24 = int_to_ptr.vmem [resolvable:$true] %s23
      %29 = dma.hbm_to_vmem [thread:$0]  %s2, 2048, %s24, [#allocation3], 128, 128, 8
    $region13: #{attention_forward.1} parent=1 // pred_fallthru
      _
    // Predicated region
    $region14: #{attention_forward.1} parent=1 // pred_check
      _
    $region15: #{attention_forward.1} parent=1 // pred_check_branch
      %31 = sbr.rel (0) target = $region17
    $region16: #{attention_forward.1} parent=1 // pred_region
      %s33 = ssub.s32 2048, 2048
      %34 = vsyncadd [#allocation6], %s33
      %s35 = sshll.u32 [#allocation5], 4
      %s36 = int_to_ptr.vmem [resolvable:$true] %s35
      %41 = dma.hbm_to_vmem [thread:$0]  %s3, 2048, %s36, [#allocation6], 128, 128, 8
    $region17: #{attention_forward.1} parent=1 // pred_fallthru
      _
    // Predicated region
    $region18: #{attention_forward.1} parent=1 // pred_check
      _
    $region19: #{attention_forward.1} parent=1 // pred_check_branch
      %43 = sbr.rel (0) target = $region21
    $region20: #{attention_forward.1} parent=1 // pred_region
      _
    $region21: #{attention_forward.1} parent=1 // pred_fallthru
      _
    // Predicated region
    $region22: #{attention_forward.1} parent=1 // pred_check
      _
    $region23: #{attention_forward.1} parent=1 // pred_check_branch
      %45 = sbr.rel (0) target = $region25
    $region24: #{attention_forward.1} parent=1 // pred_region
      _
    $region25: #{attention_forward.1} parent=1 // pred_fallthru
      _
    // Predicated region
    $region26: #{attention_forward.1} parent=1 // pred_check
      _
    $region27: #{attention_forward.1} parent=1 // pred_check_branch
      %47 = sbr.rel (0) target = $region29
    $region28: #{attention_forward.1} parent=1 // pred_region
      %48 = dma.done [#allocation3], 2048
    $region29: #{attention_forward.1} parent=1 // pred_fallthru
      _
    // Predicated region
    $region30: #{attention_forward.1} parent=1 // pred_check
      _
    $region31: #{attention_forward.1} parent=1 // pred_check_branch
      %50 = sbr.rel (0) target = $region33
    $region32: #{attention_forward.1} parent=1 // pred_region
      %51 = dma.done [#allocation6], 2048
    $region33: #{attention_forward.1} parent=1 // pred_fallthru
      _
    %v52 = vld [vmem:[%s0] sm:$0x3]
    %v53 = vld [vmem:[#allocation2] sm:$0xff]
    %v54 = vld [vmem:[#allocation2 + $0x8] sm:$0xff]
    %v55 = vld [vmem:[#allocation2 + $0x10] sm:$0xff]
    %v56 = vld [vmem:[#allocation2 + $0x18] sm:$0xff]
    %v57 = vld [vmem:[#allocation2 + $0x20] sm:$0xff]
    %v58 = vld [vmem:[#allocation2 + $0x28] sm:$0xff]
    %v59 = vld [vmem:[#allocation2 + $0x30] sm:$0xff]
    %v60 = vld [vmem:[#allocation2 + $0x38] sm:$0xff]
    %v61 = vld [vmem:[#allocation2 + $0x40] sm:$0xff]
    %v62 = vld [vmem:[#allocation2 + $0x48] sm:$0xff]
    %v63 = vld [vmem:[#allocation2 + $0x50] sm:$0xff]
    %v64 = vld [vmem:[#allocation2 + $0x58] sm:$0xff]
    %v65 = vld [vmem:[#allocation2 + $0x60] sm:$0xff]
    %v66 = vld [vmem:[#allocation2 + $0x68] sm:$0xff]
    %v67 = vld [vmem:[#allocation2 + $0x70] sm:$0xff]
    %v68 = vld [vmem:[#allocation2 + $0x78] sm:$0xff]
    %69 = vmatprep.subr.mxu0 0.0
    %70 = vmatpush1.msra.mxu0 %v68
    %71 = vmatprep.subr.mxu0 0.0
    %72 = vmatpush1.msra.mxu0 %v67
    %73 = vmatprep.subr.mxu0 0.0
    %74 = vmatpush1.msra.mxu0 %v66
    %75 = vmatprep.subr.mxu0 0.0
    %76 = vmatpush1.msra.mxu0 %v65
    %77 = vmatprep.subr.mxu0 0.0
    %78 = vmatpush1.msra.mxu0 %v64
    %79 = vmatprep.subr.mxu0 0.0
    %80 = vmatpush1.msra.mxu0 %v63
    %81 = vmatprep.subr.mxu0 0.0
    %82 = vmatpush1.msra.mxu0 %v62
    %83 = vmatprep.subr.mxu0 0.0
    %84 = vmatpush1.msra.mxu0 %v61
    %85 = vmatprep.subr.mxu0 0.0
    %86 = vmatpush1.msra.mxu0 %v60
    %87 = vmatprep.subr.mxu0 0.0
    %88 = vmatpush1.msra.mxu0 %v59
    %89 = vmatprep.subr.mxu0 0.0
    %90 = vmatpush1.msra.mxu0 %v58
    %91 = vmatprep.subr.mxu0 0.0
    %92 = vmatpush1.msra.mxu0 %v57
    %93 = vmatprep.subr.mxu0 0.0
    %94 = vmatpush1.msra.mxu0 %v56
    %95 = vmatprep.subr.mxu0 0.0
    %96 = vmatpush1.msra.mxu0 %v55
    %97 = vmatprep.subr.mxu0 0.0
    %98 = vmatpush1.msra.mxu0 %v54
    %99 = vmatprep.subr.mxu0 0.0
    %100 = vmatpush1.msra.mxu0 %v53
    %101 = vmatprep.subr.mxu0 0.0
    %102 = vmatpush2.msra.mxu0 0.0
    %103 = vmatprep.subr.mxu0 0.0
    %104 = vmatpush2.msra.mxu0 0.0
    %105 = vmatprep.subr.mxu0 0.0
    %106 = vmatpush2.msra.mxu0 0.0
    %107 = vmatprep.subr.mxu0 0.0
    %108 = vmatpush2.msra.mxu0 0.0
    %109 = vmatprep.subr.mxu0 0.0
    %110 = vmatpush2.msra.mxu0 0.0
    %111 = vmatprep.subr.mxu0 0.0
    %112 = vmatpush2.msra.mxu0 0.0
    %113 = vmatprep.subr.mxu0 0.0
    %114 = vmatpush2.msra.mxu0 0.0
    %115 = vmatprep.subr.mxu0 0.0
    %116 = vmatpush2.msra.mxu0 0.0
    %117 = vmatprep.subr.mxu0 0.0
    %118 = vmatpush2.msra.mxu0 0.0
    %119 = vmatprep.subr.mxu0 0.0
    %120 = vmatpush2.msra.mxu0 0.0
    %121 = vmatprep.subr.mxu0 0.0
    %122 = vmatpush2.msra.mxu0 0.0
    %123 = vmatprep.subr.mxu0 0.0
    %124 = vmatpush2.msra.mxu0 0.0
    %125 = vmatprep.subr.mxu0 0.0
    %126 = vmatpush2.msra.mxu0 0.0
    %127 = vmatprep.subr.mxu0 0.0
    %128 = vmatpush2.msra.mxu0 0.0
    %129 = vmatprep.subr.mxu0 0.0
    %130 = vmatpush2.msra.mxu0 0.0
    %131 = vmatprep.subr.mxu0 0.0
    %132 = vmatpush2.msra.mxu0 0.0
    %133 = vmatprep.mubr.f32.mxu0 0.0
    %134 = vmatmul.mubr.f32.gmra.mxu0 %v52
    %v135 = vpop.f32.mrf.mxu0
    %v136 = vadd.f32 0.0, %v135
    %v137 = vpop.f32.mrf.mxu0
    %138 = vdwg.mxu0
    %v139 = vld [vmem:[%s1] sm:$0xff]
    %v140 = vld [vmem:[%s1 + $0x8] sm:$0xff]
    %v141 = vld [vmem:[#allocation5] sm:$0xff]
    %v142 = vld [vmem:[#allocation5 + $0x8] sm:$0xff]
    %v143 = vld [vmem:[#allocation5 + $0x10] sm:$0xff]
    %v144 = vld [vmem:[#allocation5 + $0x18] sm:$0xff]
    %v145 = vld [vmem:[#allocation5 + $0x20] sm:$0xff]
    %v146 = vld [vmem:[#allocation5 + $0x28] sm:$0xff]
    %v147 = vld [vmem:[#allocation5 + $0x30] sm:$0xff]
    %v148 = vld [vmem:[#allocation5 + $0x38] sm:$0xff]
    %v149 = vld [vmem:[#allocation5 + $0x40] sm:$0xff]
    %v150 = vld [vmem:[#allocation5 + $0x48] sm:$0xff]
    %v151 = vld [vmem:[#allocation5 + $0x50] sm:$0xff]
    %v152 = vld [vmem:[#allocation5 + $0x58] sm:$0xff]
    %v153 = vld [vmem:[#allocation5 + $0x60] sm:$0xff]
    %v154 = vld [vmem:[#allocation5 + $0x68] sm:$0xff]
    %v155 = vld [vmem:[#allocation5 + $0x70] sm:$0xff]
    %v156 = vld [vmem:[#allocation5 + $0x78] sm:$0xff]
    %157 = vmatprep.subr.mxu0 0.0
    %158 = vmatpush1.msra.mxu0 %v156
    %159 = vmatprep.subr.mxu0 0.0
    %160 = vmatpush1.msra.mxu0 %v155
    %161 = vmatprep.subr.mxu0 0.0
    %162 = vmatpush1.msra.mxu0 %v154
    %163 = vmatprep.subr.mxu0 0.0
    %164 = vmatpush1.msra.mxu0 %v153
    %165 = vmatprep.subr.mxu0 0.0
    %166 = vmatpush1.msra.mxu0 %v152
    %167 = vmatprep.subr.mxu0 0.0
    %168 = vmatpush1.msra.mxu0 %v151
    %169 = vmatprep.subr.mxu0 0.0
    %170 = vmatpush1.msra.mxu0 %v150
    %171 = vmatprep.subr.mxu0 0.0
    %172 = vmatpush1.msra.mxu0 %v149
    %173 = vmatprep.subr.mxu0 0.0
    %174 = vmatpush1.msra.mxu0 %v148
    %175 = vmatprep.subr.mxu0 0.0
    %176 = vmatpush1.msra.mxu0 %v147
    %177 = vmatprep.subr.mxu0 0.0
    %178 = vmatpush1.msra.mxu0 %v146
    %179 = vmatprep.subr.mxu0 0.0
    %180 = vmatpush1.msra.mxu0 %v145
    %181 = vmatprep.subr.mxu0 0.0
    %182 = vmatpush1.msra.mxu0 %v144
    %183 = vmatprep.subr.mxu0 0.0
    %184 = vmatpush1.msra.mxu0 %v143
    %185 = vmatprep.subr.mxu0 0.0
    %186 = vmatpush1.msra.mxu0 %v142
    %187 = vmatprep.subr.mxu0 0.0
    %188 = vmatpush1.msra.mxu0 %v141
    %189 = vmatprep.subr.mxu0 0.0
    %190 = vmatpush2.msra.mxu0 0.0
    %191 = vmatprep.subr.mxu0 0.0
    %192 = vmatpush2.msra.mxu0 0.0
    %193 = vmatprep.subr.mxu0 0.0
    %194 = vmatpush2.msra.mxu0 0.0
    %195 = vmatprep.subr.mxu0 0.0
    %196 = vmatpush2.msra.mxu0 0.0
    %197 = vmatprep.subr.mxu0 0.0
    %198 = vmatpush2.msra.mxu0 0.0
    %199 = vmatprep.subr.mxu0 0.0
    %200 = vmatpush2.msra.mxu0 0.0
    %201 = vmatprep.subr.mxu0 0.0
    %202 = vmatpush2.msra.mxu0 0.0
    %203 = vmatprep.subr.mxu0 0.0
    %204 = vmatpush2.msra.mxu0 0.0
    %205 = vmatprep.subr.mxu0 0.0
    %206 = vmatpush2.msra.mxu0 0.0
    %207 = vmatprep.subr.mxu0 0.0
    %208 = vmatpush2.msra.mxu0 0.0
    %209 = vmatprep.subr.mxu0 0.0
    %210 = vmatpush2.msra.mxu0 0.0
    %211 = vmatprep.subr.mxu0 0.0
    %212 = vmatpush2.msra.mxu0 0.0
    %213 = vmatprep.subr.mxu0 0.0
    %214 = vmatpush2.msra.mxu0 0.0
    %215 = vmatprep.subr.mxu0 0.0
    %216 = vmatpush2.msra.mxu0 0.0
    %217 = vmatprep.subr.mxu0 0.0
    %218 = vmatpush2.msra.mxu0 0.0
    %219 = vmatprep.subr.mxu0 0.0
    %220 = vmatpush2.msra.mxu0 0.0
    %221 = vmatprep.mubr.f32.mxu0 0.0
    %222 = vmatmul.mubr.f32.gmra.mxu0 %v139
    %v223 = vpop.f32.mrf.mxu0
    %v224 = vadd.f32 0.0, %v223
    %v225 = vpop.f32.mrf.mxu0
    %226 = vmatprep.mubr.f32.mxu0 0.0
    %227 = vmatmul.mubr.f32.gmra.mxu0 %v140
    %v228 = vpop.f32.mrf.mxu0
    %v229 = vadd.f32 0.0, %v228
    %v230 = vpop.f32.mrf.mxu0
    %231 = vdwg.mxu0
    %v234 = vunpack.c.l.s4 1966171168
    %v235 = vunpack.c.0.s8 %v234
    %v236 = vlaneseq
    %v237 = vshrl.u32 %v236, 7
    %v238 = vsub.s32 %v235, %v237
    %v239 = vrot.slane %v136, %v238
    %v240 = vcombine.high %v239, %v239
    %v242 = vunpack.c.l.s4 1966171168
    %v243 = vunpack.c.0.s8 %v242
    %v244 = vlaneseq
    %v245 = vshrl.u32 %v244, 7
    %v246 = vsub.s32 %v243, %v245
    %v247 = vrot.slane %v239, %v246
    %v249 = vunpack.c.l.s4 1966171168
    %v250 = vunpack.c.0.s8 %v249
    %v251 = vlaneseq
    %v252 = vshrl.u32 %v251, 7
    %v253 = vsub.s32 %v250, %v252
    %v254 = vrot.slane %v240, %v253
    %v255 = vlaneseq
    %v256 = vshrl.u32 %v255, 7
    %v257 = vsub.s32 0, %v256
    %v258 = vrot.slane %v247, %v257
    %v259 = vlaneseq
    %v260 = vshrl.u32 %v259, 7
    %v261 = vsub.s32 0, %v260
    %v262 = vrot.slane %v254, %v261
    %v265 = vadd.f32 %v224, %v258
    %v266 = vadd.f32 %v229, %v262
    %v267 = vld [vmem:[%s4] sm:$0x1]
    %v269 = vlaneseq
    %v270 = vshrl.u32 %v269, 7
    %v271 = vsub.s32 0, %v270
    %v272 = vrot.slane %v267, %v271
    %v274 = vadd.f32 %v265, %v272
    %v275 = vadd.f32 %v266, %v272
    %v276 = vtanh.pop %v274
    %v277 = vtanh.pop %v275
    %v278 = vld [vmem:[%s5] sm:$0x1]
    %v280 = vlaneseq
    %v281 = vshrl.u32 %v280, 7
    %v282 = vsub.s32 0, %v281
    %v283 = vrot.slane %v278, %v282
    %v285 = vmul.f32 %v276, %v283
    %v286 = vmul.f32 %v277, %v283
    %287 = vadd.xlane.f32.xlu0 %v285
    %v288 = vpop.xlane.xlu0 %287
    %289 = vadd.xlane.f32.xlu0 %v286
    %v290 = vpop.xlane.xlu0 %289
    %v293 = vlaneseq
    %v294 = vand.u32 %v293, 127
    %v295 = vlaneseq
    %v296 = vshrl.u32 %v295, 7
    %v297 = vsub.s32 %v294, %v296
    %v298 = vrot.slane %v288, %v297
    %v299 = vlaneseq
    %v300 = vshrl.u32 %v299, 7
    %v301 = vsub.s32 %v294, %v300
    %v302 = vrot.slane %v290, %v301
    %vm303 = vcmask 1041409
    %v304 = vsel %vm303, %v302, %v298
    %vm306 = vcmask 58368
    %v307 = vsel %vm306, %v304, -inf
    %308 = vmax.xlane.f32.xlu0 %v307
    %v309 = vpop.xlane.xlu0 %308
    %v311 = vlaneseq
    %v312 = vshrl.u32 %v311, 7
    %v313 = vsub.s32 0, %v312
    %v314 = vrot.slane %v309, %v313
    %v315 = vlaneseq
    %v316 = vshrl.u32 %v315, 7
    %v317 = vsub.s32 1, %v316
    %v318 = vrot.slane %v309, %v317
    %v321 = vsub.f32 %v288, %v314
    %v322 = vsub.f32 %v290, %v318
    %v323 = vmul.f32 %v321, 1.442695
    %v324 = vpow.pop %v323
    %v325 = vmul.f32 %v322, 1.442695
    %v326 = vpow.pop %v325
    %329 = vset.pattern.permute.xlu0 0
    %330 = vperm.xlu0 %329, %v324
    %v331 = vpop.permute.xlu0 %330
    %332 = vset.pattern.permute.xlu0 0
    %333 = vperm.xlu0 %332, %v326
    %v334 = vpop.permute.xlu0 %333
    %v335 = vlaneseq
    %v336 = vshrl.u32 %v335, 7
    %v337 = vsub.s32 %v294, %v336
    %v338 = vrot.slane %v331, %v337
    %v339 = vlaneseq
    %v340 = vshrl.u32 %v339, 7
    %v341 = vsub.s32 %v294, %v340
    %v342 = vrot.slane %v334, %v341
    %v343 = vsel %vm303, %v342, %v338
    %v345 = vsel %vm306, %v343, 0.0
    %346 = vadd.xlane.f32.xlu0 %v345
    %v347 = vpop.xlane.xlu0 %346
    %v349 = vlaneseq
    %v350 = vshrl.u32 %v349, 7
    %v351 = vsub.s32 0, %v350
    %v352 = vrot.slane %v347, %v351
    %v353 = vlaneseq
    %v354 = vshrl.u32 %v353, 7
    %v355 = vsub.s32 1, %v354
    %v356 = vrot.slane %v347, %v355
    %v359 = vrcp.pop %v352
    %v360 = vmul.f32 %v324, %v359
    %v361 = vrcp.pop %v356
    %v362 = vmul.f32 %v326, %v361
    %365 = vset.pattern.permute.xlu0 0
    %366 = vperm.xlu0 %365, %v360
    %v367 = vpop.permute.xlu0 %366
    %368 = vset.pattern.permute.xlu0 0
    %369 = vperm.xlu0 %368, %v362
    %v370 = vpop.permute.xlu0 %369
    %v371 = vlaneseq
    %v372 = vshrl.u32 %v371, 7
    %v373 = vsub.s32 %v294, %v372
    %v374 = vrot.slane %v367, %v373
    %v375 = vlaneseq
    %v376 = vshrl.u32 %v375, 7
    %v377 = vsub.s32 %v294, %v376
    %v378 = vrot.slane %v370, %v377
    %v379 = vsel %vm303, %v378, %v374
    %381 = vst.msk [vmem:[#allocation7] sm:$0x3] %vm306, %v379
    // Predicated region
    $region34: #{attention_forward.1} parent=1 // pred_check
      _
    $region35: #{attention_forward.1} parent=1 // pred_check_branch
      %383 = sbr.rel (0) target = $region37
    $region36: #{attention_forward.1} parent=1 // pred_region
      %s385 = ssub.s32 32, 32
      %386 = vsyncadd [#allocation4], %s385
      %s388 = sshll.u32 [#allocation7], 4
      %s389 = int_to_ptr.vmem [resolvable:$true] %s388
      %391 = dma.vmem_to_hbm [thread:$0]  %s389, 32, %s6, [#allocation4]
    $region37: #{attention_forward.1} parent=1 // pred_fallthru
      _
    // Predicated region
    $region38: #{attention_forward.1} parent=1 // pred_check
      _
    $region39: #{attention_forward.1} parent=1 // pred_check_branch
      %393 = sbr.rel (0) target = $region41
    $region40: #{attention_forward.1} parent=1 // pred_region
      %394 = dma.done [#allocation4], 32
    $region41: #{attention_forward.1} parent=1 // pred_fallthru
      _
    %395 = vsyncpa [#allocation3], 1
    %396 = vsyncpa [#allocation6], 1
    %397 = vsyncpa [#allocation4], 1

</llo_original>
